<compile_context>
chip_gen: v6e
topology: v6e:2x2x1
jax: 0.10.0
libtpu: 0.0.40
codegen_flags: <defaults>
</compile_context>

<pallas_src>
import jax
import jax.numpy as jnp
from jax.experimental import pallas as pl
from jax.experimental.pallas import tpu as pltpu


def _wrapmodel_kernel(x_ref, w_ref, b_ref, o_ref, acc_ref):
    # Normalization already folded into (W', b') in the wrapper -> pure matmul.
    k = pl.program_id(1)

    @pl.when(k == 0)
    def _():
        acc_ref[...] = jnp.zeros_like(acc_ref)

    acc_ref[...] += jnp.dot(x_ref[...], w_ref[...],
                            preferred_element_type=jnp.float32)

    @pl.when(k == pl.num_programs(1) - 1)
    def _():
        o_ref[...] = (acc_ref[...] + b_ref[...]).astype(o_ref.dtype)


def _round_up(x, m):
    return (x + m - 1) // m * m


def wrap_model_forward(x_nchw, mean_c, std_c, w, b, *, tk=512, tn=128):
    """WrapModel.forward: model(normalize(input)).

    x_nchw : (N, C, H, W) float32
    mean_c, std_c : (C,) per-channel normalization constants
    w : (C*H*W, num_classes) linear weight (already transposed for x @ w)
    b : (num_classes,) linear bias
    """
    N, C, H, W = x_nchw.shape
    F = C * H * W
    num_classes = w.shape[1]

    # --- Fold normalization into the linear layer (free constant-folding for
    # inference; removes the (1,F) mean/std operands and all VPU work from the
    # kernel):  (x - m)*s @ w + b  ==  x @ (w*s) + (b - (m*s) @ w) ---
    inv_std_flat = (1.0 / jnp.repeat(std_c, H * W)).astype(jnp.float32)   # (F,)
    mean_flat = jnp.repeat(mean_c, H * W).astype(jnp.float32)             # (F,)
    w_f32 = w.astype(jnp.float32)
    w_fold = w_f32 * inv_std_flat[:, None]                                # (F, nc)
    b_fold = b.astype(jnp.float32) - (mean_flat * inv_std_flat) @ w_f32   # (nc,)

    # --- TPU-friendly padding: sublane multiple on N, lane-dense (128-multiple)
    # output classes, reduction axis a multiple of the reduction tile tk ---
    Np = _round_up(max(N, 1), 8)
    Ncp = _round_up(num_classes, 128)
    tn = min(tn, Ncp)
    tk = min(tk, _round_up(F, 128))
    Fp = _round_up(F, tk)

    x_flat = x_nchw.reshape(N, F).astype(jnp.float32)
    x_pad = jnp.zeros((Np, Fp), jnp.float32).at[:N, :F].set(x_flat)
    w_pad = jnp.zeros((Fp, Ncp), jnp.float32).at[:F, :num_classes].set(w_fold)
    b_pad = jnp.zeros((1, Ncp), jnp.float32).at[0, :num_classes].set(b_fold)

    # bf16 MXU inputs (f32 accumulation inside the kernel) -> ~2x less HBM
    # traffic on the weight stream, which dominates at small batch.
    x_bf = x_pad.astype(jnp.bfloat16)
    w_bf = w_pad.astype(jnp.bfloat16)

    grid = (Ncp // tn, Fp // tk)  # (parallel over classes, reduction over F)

    cost = pl.CostEstimate(
        flops=2 * Np * Fp * Ncp,
        bytes_accessed=2 * Np * Fp + 2 * Fp * Ncp + 4 * Ncp + 4 * Np * Ncp,
        transcendentals=0,
    )

    out_pad = pl.pallas_call(
        _wrapmodel_kernel,
        out_shape=jax.ShapeDtypeStruct((Np, Ncp), jnp.float32),
        grid_spec=pltpu.PrefetchScalarGridSpec(
            num_scalar_prefetch=0,
            grid=grid,
            in_specs=[
                pl.BlockSpec((Np, tk), lambda j, k: (0, k)),
                pl.BlockSpec((tk, tn), lambda j, k: (k, j)),
                pl.BlockSpec((1, tn), lambda j, k: (0, j)),
            ],
            out_specs=pl.BlockSpec((Np, tn), lambda j, k: (0, j)),
            scratch_shapes=[pltpu.VMEM((Np, tn), jnp.float32)],
        ),
        compiler_params=pltpu.CompilerParams(
            dimension_semantics=("parallel", "arbitrary"),
            # Stay well under v7x's 64 MiB physical VMEM (also fine on v5e/v6e).
            vmem_limit_bytes=48 << 20,
        ),
        cost_estimate=cost,
    )(x_bf, w_bf, b_pad)

    return out_pad[:N, :num_classes]


def reference_forward(x_nchw, mean_c, std_c, w, b):
    # Pure-JAX f32 reference of the same semantics.
    N, C, H, W = x_nchw.shape
    xn = (x_nchw - mean_c.reshape(1, C, 1, 1)) / std_c.reshape(1, C, 1, 1)
    return xn.reshape(N, -1) @ w + b


if __name__ == "__main__":
    key = jax.random.PRNGKey(0)
    k_x, k_w, k_b = jax.random.split(key, 3)

    # Small shapes consistent with an image-classification WrapModel.
    N, C, H, W = 2, 4, 16, 16
    num_classes = 16
    F = C * H * W

    x = jax.random.uniform(k_x, (N, C, H, W), dtype=jnp.float32)  # image-like [0,1)

    # Deterministic normalization constants (ImageNet-style, padded to C=4).
    mean_c = jnp.array([0.485, 0.456, 0.406, 0.5], dtype=jnp.float32)[:C]
    std_c = jnp.array([0.229, 0.224, 0.225, 0.25], dtype=jnp.float32)[:C]

    # Deterministic "model" parameters (linear classifier head).
    # TODO(synk): an arbitrary backbone (e.g. ResNet conv stack) inside
    # WrapModel is not translated; the fused normalize->linear head is.
    w = jax.random.normal(k_w, (F, num_classes), dtype=jnp.float32) * 0.02
    b = jax.random.normal(k_b, (num_classes,), dtype=jnp.float32) * 0.01

    out = wrap_model_forward(x, mean_c, std_c, w, b)
    out = jax.block_until_ready(out)

    ref = reference_forward(x, mean_c, std_c, w, b)
    assert out.shape == (N, num_classes)
    # bf16 MXU inputs (f32 accumulation) -> loosen tolerance vs f32 reference.
    assert jnp.allclose(out, ref, atol=3e-2, rtol=3e-2), "mismatch vs reference"

    print("KERNEL_OK")
</pallas_src>

<mosaic_0001>
module attributes {stable_mosaic.version = 11 : i64} {
  func.func @_wrapmodel_kernel(%arg0: i32, %arg1: i32, %arg2: memref<8x512xbf16, #tpu.memory_space<vmem>>, %arg3: memref<512x128xbf16, #tpu.memory_space<vmem>>, %arg4: memref<1x128xf32, #tpu.memory_space<vmem>>, %arg5: memref<8x128xf32, #tpu.memory_space<vmem>>, %arg6: memref<8x128xf32, #tpu.memory_space<vmem>>) attributes {dimension_semantics = [#tpu.dimension_semantics<parallel>, #tpu.dimension_semantics<arbitrary>], iteration_bounds = array<i64: 1, 2>, scalar_prefetch = 0 : i64, scratch_operands = 1 : i64, tpu.core_type = #tpu.core_type<tc>, window_params = [{transform_indices = @transform_0, window_bounds = array<i64: 8, 512>}, {transform_indices = @transform_1, window_bounds = array<i64: 512, 128>}, {transform_indices = @transform_2, window_bounds = array<i64: 1, 128>}, {transform_indices = @transform_3, window_bounds = array<i64: 8, 128>}]} {
    %c0_i32 = arith.constant 0 : i32
    %0 = arith.cmpi eq, %arg1, %c0_i32 : i32
    %1 = arith.extui %0 : i1 to i32
    %c0_i32_0 = arith.constant 0 : i32
    %2 = arith.cmpi ne, %1, %c0_i32_0 : i32
    scf.if %2 {
      %cst_9 = arith.constant 0.000000e+00 : f32
      %12 = vector.broadcast %cst_9 : f32 to vector<8x128xf32>
      %c0_10 = arith.constant 0 : index
      %c0_11 = arith.constant 0 : index
      %13 = vector.load %arg6[%c0_10, %c0_11] : memref<8x128xf32, #tpu.memory_space<vmem>>, vector<8x128xf32>
      tpu.vector_store %arg6[%c0_10, %c0_11], %12 {strides = array<i32>} : memref<8x128xf32, #tpu.memory_space<vmem>>, vector<8x128xf32>,
    } else {
    }
    %c0 = arith.constant 0 : index
    %c0_1 = arith.constant 0 : index
    %3 = vector.load %arg6[%c0, %c0_1] : memref<8x128xf32, #tpu.memory_space<vmem>>, vector<8x128xf32>
    %c0_2 = arith.constant 0 : index
    %c0_3 = arith.constant 0 : index
    %4 = vector.load %arg2[%c0_2, %c0_3] : memref<8x512xbf16, #tpu.memory_space<vmem>>, vector<8x512xbf16>
    %c0_4 = arith.constant 0 : index
    %c0_5 = arith.constant 0 : index
    %5 = vector.load %arg3[%c0_4, %c0_5] : memref<512x128xbf16, #tpu.memory_space<vmem>>, vector<512x128xbf16>
    %cst = arith.constant dense<0.000000e+00> : vector<8x128xf32>
    %6 = tpu.matmul %4, %5, %cst {dimension_numbers = #tpu.dot_dimension_numbers<[1], [0], [0], [1], [0, 0, 1, 1], [], []>} : vector<8x512xbf16>, vector<512x128xbf16>, vector<8x128xf32> -> vector<8x128xf32>
    %7 = arith.addf %3, %6 : vector<8x128xf32>
    %c0_6 = arith.constant 0 : index
    %c0_7 = arith.constant 0 : index
    %8 = vector.load %arg6[%c0_6, %c0_7] : memref<8x128xf32, #tpu.memory_space<vmem>>, vector<8x128xf32>
    tpu.vector_store %arg6[%c0_6, %c0_7], %7 {strides = array<i32>} : memref<8x128xf32, #tpu.memory_space<vmem>>, vector<8x128xf32>,
    %c1_i32 = arith.constant 1 : i32
    %9 = arith.cmpi eq, %arg1, %c1_i32 : i32
    %10 = arith.extui %9 : i1 to i32
    %c0_i32_8 = arith.constant 0 : i32
    %11 = arith.cmpi ne, %10, %c0_i32_8 : i32
    scf.if %11 {
      %c0_9 = arith.constant 0 : index
      %c0_10 = arith.constant 0 : index
      %12 = vector.load %arg6[%c0_9, %c0_10] : memref<8x128xf32, #tpu.memory_space<vmem>>, vector<8x128xf32>
      %c0_11 = arith.constant 0 : index
      %c0_12 = arith.constant 0 : index
      %13 = vector.load %arg4[%c0_11, %c0_12] : memref<1x128xf32, #tpu.memory_space<vmem>>, vector<1x128xf32>
      %14 = vector.broadcast %13 : vector<1x128xf32> to vector<8x128xf32>
      %15 = arith.addf %12, %14 : vector<8x128xf32>
      %c0_13 = arith.constant 0 : index
      %c0_14 = arith.constant 0 : index
      %16 = vector.load %arg5[%c0_13, %c0_14] : memref<8x128xf32, #tpu.memory_space<vmem>>, vector<8x128xf32>
      tpu.vector_store %arg5[%c0_13, %c0_14], %15 {strides = array<i32>} : memref<8x128xf32, #tpu.memory_space<vmem>>, vector<8x128xf32>,
    } else {
    }
    return
  }
  func.func @transform_0(%arg0: i32, %arg1: i32) -> (i32, i32) {
    %c0_i32 = arith.constant 0 : i32
    %c0_i32_0 = arith.constant 0 : i32
    return %c0_i32, %arg1 : i32, i32
  }
  func.func @transform_1(%arg0: i32, %arg1: i32) -> (i32, i32) {
    %c0_i32 = arith.constant 0 : i32
    return %arg1, %arg0 : i32, i32
  }
  func.func @transform_2(%arg0: i32, %arg1: i32) -> (i32, i32) {
    %c0_i32 = arith.constant 0 : i32
    %c0_i32_0 = arith.constant 0 : i32
    return %c0_i32, %arg0 : i32, i32
  }
  func.func @transform_3(%arg0: i32, %arg1: i32) -> (i32, i32) {
    %c0_i32 = arith.constant 0 : i32
    %c0_i32_0 = arith.constant 0 : i32
    return %c0_i32, %arg0 : i32, i32
  }
}

</mosaic_0001>

<llo_original>
// kernel: tpu_custom_call.1
$region0: #{tpu_custom_call.1}
  #allocation0 [shape = 'u32[]', space=smem, size = 0x4, offset = 0x4, fixed_abs, tag = 'smem constant byte address 0x4 - core index']
  #allocation1 [shape = 'u32[144,128]{1,0:T(1,128)}', space=vmem, size = 0x12000, scoped, tag = 'internal scratch']
  #allocation2 [shape = 'f32[8,128]{1,0:T(8,128)}', space=vmem, size = 0x1000, scoped, tag = 'scratch operand']
  %s0 = inlined_call_operand.hbm [shape: bf16[8,1024], index: 0, kind: input, shape index: {}]
  %s1 = inlined_call_operand.hbm [shape: bf16[1024,128], index: 1, kind: input, shape index: {}]
  %s2 = inlined_call_operand.vmem [shape: f32[1,128], index: 2, kind: input, shape index: {}]
  %s3 = inlined_call_operand.hbm [shape: f32[8,128], index: 3, kind: output, shape index: {}]
  %s4 = sld [smem:[#allocation0]]
  $region61: #{tpu_custom_call.1} parent=0
    _
  %s6 = ssub.s32 1, %s4
  %s7 = scalar_select 0, %s6, %s4
  $region1: #{tpu_custom_call.1} parent=0
    #allocation3 [shape = 'u8[16384]{0}', space=vmem, size = 0x4000, scoped, tag = 'input window, operand 0']
    #allocation4 [shape = 's32[2]{0}', space=sflag, size = 0x8, scoped, tag = 'scoped memory for tpu_custom_call.1']
    #allocation5 [shape = 's32[2]{0}', space=sflag, size = 0x8, scoped, tag = 'scoped memory for tpu_custom_call.1']
    #allocation6 [shape = 'u8[262144]{0}', space=vmem, size = 0x40000, scoped, tag = 'input window, operand 1']
    #allocation7 [shape = 's32[2]{0}', space=sflag, size = 0x8, scoped, tag = 'scoped memory for tpu_custom_call.1']
    #allocation8 [shape = 'u8[4096]{0}', space=vmem, size = 0x1000, scoped, tag = 'output window, operand 0, single buffered']
    %8 = vsyncpa [#allocation4], 0
    %s9 = scalar_lea.sflag [#allocation4], 1
    %10 = vsyncpa %s9, 0
    %11 = vsyncpa [#allocation7], 0
    %s12 = scalar_lea.sflag [#allocation7], 1
    %13 = vsyncpa %s12, 0
    %14 = vsyncpa [#allocation5], 0
    loop: start=0, step=1, limit=4
    $region2: #{tpu_custom_call.1} parent=1 // loop_pre_header
      _
    $region3: #{tpu_custom_call.1} parent=1 // loop_header
      %s16 = sphi 0, %s20
      %p17 = scmp.ge.s32.totalorder %s16, 4
      %s23 = sphi 0, %s35
      %s24 = sphi 0, %s31
      %s25 = sphi 0, %s23
      %s26 = sphi 0, %s24
      %s27 = sphi 0, %s25
      %s28 = sphi 0, %s26
      %s38 = sphi 0, %s40
      %s41 = sphi 0, %s38
      %s42 = sphi 0, %s41
      %s58 = sphi 0, %s42
      %s66 = sphi 0, %s68
      %s69 = sphi 0, %s66
      %s70 = sphi 0, %s69
      %s86 = sphi 0, %s70
      %s92 = sphi 0, %s94
      %s95 = sphi 0, %s92
      %s96 = sphi 0, %s95
      %s112 = sphi 0, %s96
      %s118 = sphi 0, %s120
      %s121 = sphi 0, %s118
      %s122 = sphi 0, %s121
      %s138 = sphi 0, %s122
    $region4: #{tpu_custom_call.1} parent=1 // loop_header_branch
      %19 = sbr.rel (%p17) target = $region8
    $region5: #{tpu_custom_call.1} parent=1 // loop_body
      %s21 = ssub.s32 %s16, 1
      %s22 = ssub.s32 %s16, 2
      %s29 = sadd.s32 1, %s24
      %p30 = scmp.ge.s32.totalorder %s29, 2
      %s31 = scalar_select %p30, 0, %s29
      %s32 = sadd.s32 1, %s23
      %s33 = scalar_select %p30, %s32, %s23
      %p34 = scmp.ge.s32.totalorder %s33, 1
      %s35 = scalar_select %p34, 0, %s33
      %s36 = ssub.s32 %s24, %s31
      %p37 = scmp.eq.s32.totalorder %s36, 0
      %s39 = sadd.s32 %s38, 1
      %s40 = scalar_select %p37, %s38, %s39
      %p43 = pneg %p37
      %p44 = scmp.eq.s32.totalorder %s16, 1
      %p45 = por %p43, %p44
      %p46 = scmp.ne.s32.totalorder %s38, %s41
      %p47 = scmp.eq.s32.totalorder %s16, 0
      %p48 = por %p46, %p47
      %p49 = scmp.ne.s32.totalorder %s38, %s41
      %p50 = scmp.eq.s32.totalorder %s21, 1
      %p51 = por %p49, %p50
      %p52 = scmp.ne.s32.totalorder %s41, %s42
      %p53 = scmp.eq.s32.totalorder %s21, 0
      %p54 = por %p52, %p53
      %p55 = scmp.ne.s32.totalorder %s41, %s42
      %p56 = scmp.eq.s32.totalorder %s22, 1
      %p57 = por %p55, %p56
      %p59 = scmp.ne.s32.totalorder %s42, %s58
      %p60 = scmp.eq.s32.totalorder %s22, 0
      %p61 = por %p59, %p60
      %s62 = ssub.s32 %s24, %s31
      %s63 = ssub.s32 %s23, %s35
      %s64 = sor.u32 %s62, %s63
      %p65 = scmp.eq.s32.totalorder %s64, 0
      %s67 = sadd.s32 %s66, 1
      %s68 = scalar_select %p65, %s66, %s67
      %p71 = pneg %p65
      %p72 = scmp.eq.s32.totalorder %s16, 1
      %p73 = por %p71, %p72
      %p74 = scmp.ne.s32.totalorder %s66, %s69
      %p75 = scmp.eq.s32.totalorder %s16, 0
      %p76 = por %p74, %p75
      %p77 = scmp.ne.s32.totalorder %s66, %s69
      %p78 = scmp.eq.s32.totalorder %s21, 1
      %p79 = por %p77, %p78
      %p80 = scmp.ne.s32.totalorder %s69, %s70
      %p81 = scmp.eq.s32.totalorder %s21, 0
      %p82 = por %p80, %p81
      %p83 = scmp.ne.s32.totalorder %s69, %s70
      %p84 = scmp.eq.s32.totalorder %s22, 1
      %p85 = por %p83, %p84
      %p87 = scmp.ne.s32.totalorder %s70, %s86
      %p88 = scmp.eq.s32.totalorder %s22, 0
      %p89 = por %p87, %p88
      %s90 = ssub.s32 %s23, %s35
      %p91 = scmp.eq.s32.totalorder %s90, 0
      %s93 = sadd.s32 %s92, 1
      %s94 = scalar_select %p91, %s92, %s93
      %p97 = pneg %p91
      %p98 = scmp.eq.s32.totalorder %s16, 1
      %p99 = por %p97, %p98
      %p100 = scmp.ne.s32.totalorder %s92, %s95
      %p101 = scmp.eq.s32.totalorder %s16, 0
      %p102 = por %p100, %p101
      %p103 = scmp.ne.s32.totalorder %s92, %s95
      %p104 = scmp.eq.s32.totalorder %s21, 1
      %p105 = por %p103, %p104
      %p106 = scmp.ne.s32.totalorder %s95, %s96
      %p107 = scmp.eq.s32.totalorder %s21, 0
      %p108 = por %p106, %p107
      %p109 = scmp.ne.s32.totalorder %s95, %s96
      %p110 = scmp.eq.s32.totalorder %s22, 1
      %p111 = por %p109, %p110
      %p113 = scmp.ne.s32.totalorder %s96, %s112
      %p114 = scmp.eq.s32.totalorder %s22, 0
      %p115 = por %p113, %p114
      %s116 = ssub.s32 %s23, %s35
      %p117 = scmp.eq.s32.totalorder %s116, 0
      %s119 = sadd.s32 %s118, 1
      %s120 = scalar_select %p117, %s118, %s119
      %p123 = pneg %p117
      %p124 = scmp.eq.s32.totalorder %s16, 1
      %p125 = por %p123, %p124
      %p126 = scmp.ne.s32.totalorder %s118, %s121
      %p127 = scmp.eq.s32.totalorder %s16, 0
      %p128 = por %p126, %p127
      %p129 = scmp.ne.s32.totalorder %s118, %s121
      %p130 = scmp.eq.s32.totalorder %s21, 1
      %p131 = por %p129, %p130
      %p132 = scmp.ne.s32.totalorder %s121, %s122
      %p133 = scmp.eq.s32.totalorder %s21, 0
      %p134 = por %p132, %p133
      %p135 = scmp.ne.s32.totalorder %s121, %s122
      %p136 = scmp.eq.s32.totalorder %s22, 1
      %p137 = por %p135, %p136
      %p139 = scmp.ne.s32.totalorder %s122, %s138
      %p140 = scmp.eq.s32.totalorder %s22, 0
      %p141 = por %p139, %p140
      %p142 = scmp.le.s32.totalorder 1, %s16
      %p143 = scmp.lt.s32.totalorder %s16, 3
      %p144 = pnand %p142, %p143
      %p145 = pneg %p144
      // Predicated region
      $region9: #{tpu_custom_call.1} parent=5 // pred_check
        _
      $region10: #{tpu_custom_call.1} parent=5 // pred_check_branch
        %147 = sbr.rel (%p144) target = $region12
      $region11: #{tpu_custom_call.1} parent=5 // pred_region
        %s148 = ssub.s32 %s16, 1
        // Predicated region
        $region13: #{tpu_custom_call.1} parent=11 // pred_check
          %p149 = pneg %p108
        $region14: #{tpu_custom_call.1} parent=11 // pred_check_branch
          %151 = sbr.rel (%p149) target = $region16
        $region15: #{tpu_custom_call.1} parent=11 // pred_region
          %p152 = scmp.lt.s32.totalorder %s25, 0
          %s153 = scalar_select %p152, %s25, 0
          %s154 = scalar_lea.vmem %s2, %s153
        $region16: #{tpu_custom_call.1} parent=11 // pred_fallthru
          _
      $region12: #{tpu_custom_call.1} parent=5 // pred_fallthru
        _
      %p155 = scmp.lt.s32.totalorder %s16, 2
      // Predicated region
      $region17: #{tpu_custom_call.1} parent=5 // pred_check
        %p156 = pneg %p155
      $region18: #{tpu_custom_call.1} parent=5 // pred_check_branch
        %158 = sbr.rel (%p156) target = $region20
      $region19: #{tpu_custom_call.1} parent=5 // pred_region
        // Predicated region
        $region21: #{tpu_custom_call.1} parent=19 // pred_check
          %p159 = pneg %p48
        $region22: #{tpu_custom_call.1} parent=19 // pred_check_branch
          %161 = sbr.rel (%p159) target = $region24
        $region23: #{tpu_custom_call.1} parent=19 // pred_region
          %s162 = sand.u32 %s38, 1
          %s163 = scalar_lea.sflag [#allocation4], %s162
          %s164 = sand.u32 %s38, 1
          %s165 = smul.addr %s164, 16
          %s166 = scalar_lea.vmem [#allocation3], %s165
          %s167 = smul.u32 4, %s24
          %s169 = ssub.s32 256, 256
          %170 = vsyncadd %s163, %s169
          %s171 = smul.addr %s167, 64
          %s172 = scalar_lea.hbm %s0, %s171
          %s174 = sshll.u32 %s166, 4
          %s175 = int_to_ptr.vmem [resolvable:$true] %s174
          %177 = dma.hbm_to_vmem [thread:$0]  %s172, 256, %s175, %s163
        $region24: #{tpu_custom_call.1} parent=19 // pred_fallthru
          _
        // Predicated region
        $region25: #{tpu_custom_call.1} parent=19 // pred_check
          %p178 = pneg %p76
        $region26: #{tpu_custom_call.1} parent=19 // pred_check_branch
          %180 = sbr.rel (%p178) target = $region28
        $region27: #{tpu_custom_call.1} parent=19 // pred_region
          %s181 = sand.u32 %s66, 1
          %s182 = scalar_lea.sflag [#allocation7], %s181
          %s183 = sand.u32 %s66, 1
          %s184 = smul.addr %s183, 256
          %s185 = scalar_lea.vmem [#allocation6], %s184
          %s186 = smul.u32 64, %s24
          %s188 = ssub.s32 4096, 4096
          %189 = vsyncadd %s182, %s188
          %s190 = sadd.s32 %s23, %s186
          %s191 = smul.addr %s190, 64
          %s192 = scalar_lea.hbm %s1, %s191
          %s193 = sshll.u32 %s185, 4
          %s194 = int_to_ptr.vmem [resolvable:$true] %s193
          %199 = dma.hbm_to_vmem [thread:$0]  %s192, 4096, %s194, %s182, 64, 64, 4
        $region28: #{tpu_custom_call.1} parent=19 // pred_fallthru
          _
      $region20: #{tpu_custom_call.1} parent=5 // pred_fallthru
        _
      %p200 = scmp.le.s32.totalorder 1, %s16
      %p201 = scmp.lt.s32.totalorder %s16, 3
      %p202 = pnand %p200, %p201
      %p203 = pneg %p202
      // Predicated region
      $region29: #{tpu_custom_call.1} parent=5 // pred_check
        _
      $region30: #{tpu_custom_call.1} parent=5 // pred_check_branch
        %205 = sbr.rel (%p202) target = $region32
      $region31: #{tpu_custom_call.1} parent=5 // pred_region
        %s206 = ssub.s32 %s16, 1
        %s207 = sand.u32 %s41, 1
        %s208 = scalar_lea.sflag [#allocation4], %s207
        %s209 = sand.u32 %s41, 1
        %s210 = smul.addr %s209, 16
        %s211 = scalar_lea.vmem [#allocation3], %s210
        // Predicated region
        $region33: #{tpu_custom_call.1} parent=31 // pred_check
          %p212 = pneg %p54
        $region34: #{tpu_custom_call.1} parent=31 // pred_check_branch
          %214 = sbr.rel (%p212) target = $region36
        $region35: #{tpu_custom_call.1} parent=31 // pred_region
          %215 = dma.done %s208, 256
        $region36: #{tpu_custom_call.1} parent=31 // pred_fallthru
          _
        %s216 = sand.u32 %s69, 1
        %s217 = scalar_lea.sflag [#allocation7], %s216
        %s218 = sand.u32 %s69, 1
        %s219 = smul.addr %s218, 256
        %s220 = scalar_lea.vmem [#allocation6], %s219
        // Predicated region
        $region37: #{tpu_custom_call.1} parent=31 // pred_check
          %p221 = pneg %p82
        $region38: #{tpu_custom_call.1} parent=31 // pred_check_branch
          %223 = sbr.rel (%p221) target = $region40
        $region39: #{tpu_custom_call.1} parent=31 // pred_region
          %224 = dma.done %s217, 4096
        $region40: #{tpu_custom_call.1} parent=31 // pred_fallthru
          _
        %s225 = sand.u32 %s41, 1
        %s226 = scalar_lea.sflag [#allocation4], %s225
        %s227 = sand.u32 %s41, 1
        %s228 = smul.addr %s227, 16
        %s229 = scalar_lea.vmem [#allocation3], %s228
        %p230 = pneg %p54
        %p231 = pneg %p51
        %s232 = sand.u32 %s69, 1
        %s233 = scalar_lea.sflag [#allocation7], %s232
        %s234 = sand.u32 %s69, 1
        %s235 = smul.addr %s234, 256
        %s236 = scalar_lea.vmem [#allocation6], %s235
        %p237 = pneg %p82
        %p238 = pneg %p79
        %p239 = scmp.lt.s32.totalorder %s25, 0
        %s240 = scalar_select %p239, %s25, 0
        %s241 = scalar_lea.vmem %s2, %s240
        %p242 = pneg %p108
        %p243 = pneg %p105
        %p244 = pneg %p134
        %p245 = pneg %p131
        %s246 = smul.u32 4, %s26
        %s247 = smul.u32 64, %s26
        %p248 = scmp.lt.s32.totalorder %s25, 0
        %s249 = scalar_select %p248, %s25, 0
        %s250 = scalar_lea.vmem %s2, %s249
        %p252 = scmp.eq.s32.totalorder %s26, 0
        // Predicated region
        $region41: #{tpu_custom_call.1} parent=31 // pred_check
          %p253 = pneg %p252
        $region42: #{tpu_custom_call.1} parent=31 // pred_check_branch
          %255 = sbr.rel (%p253) target = $region44
        $region43: #{tpu_custom_call.1} parent=31 // pred_region
          %256 = vst [vmem:[#allocation2] sm:$0xff] 0.0
        $region44: #{tpu_custom_call.1} parent=31 // pred_fallthru
          _
        %v257 = vld [vmem:[#allocation2] sm:$0xff]
        %v258 = vld [vmem:[%s211] sm:$0xff]
        %v259 = vld [vmem:[%s211 + $0x8] sm:$0xff]
        %v260 = vld [vmem:[%s220] sm:$0xf]
        %v261 = vld [vmem:[%s220 + $0x4] sm:$0xf]
        %v262 = vld [vmem:[%s220 + $0x8] sm:$0xf]
        %v263 = vld [vmem:[%s220 + $0xc] sm:$0xf]
        %v264 = vld [vmem:[%s220 + $0x10] sm:$0xf]
        %v265 = vld [vmem:[%s220 + $0x14] sm:$0xf]
        %v266 = vld [vmem:[%s220 + $0x18] sm:$0xf]
        %v267 = vld [vmem:[%s220 + $0x1c] sm:$0xf]
        %v268 = vld [vmem:[%s220 + $0x20] sm:$0xf]
        %v269 = vld [vmem:[%s220 + $0x24] sm:$0xf]
        %v270 = vld [vmem:[%s220 + $0x28] sm:$0xf]
        %v271 = vld [vmem:[%s220 + $0x2c] sm:$0xf]
        %v272 = vld [vmem:[%s220 + $0x30] sm:$0xf]
        %v273 = vld [vmem:[%s220 + $0x34] sm:$0xf]
        %v274 = vld [vmem:[%s220 + $0x38] sm:$0xf]
        %v275 = vld [vmem:[%s220 + $0x3c] sm:$0xf]
        %v276 = vld [vmem:[%s220 + $0x40] sm:$0xf]
        %v277 = vld [vmem:[%s220 + $0x44] sm:$0xf]
        %v278 = vld [vmem:[%s220 + $0x48] sm:$0xf]
        %v279 = vld [vmem:[%s220 + $0x4c] sm:$0xf]
        %v280 = vld [vmem:[%s220 + $0x50] sm:$0xf]
        %v281 = vld [vmem:[%s220 + $0x54] sm:$0xf]
        %v282 = vld [vmem:[%s220 + $0x58] sm:$0xf]
        %v283 = vld [vmem:[%s220 + $0x5c] sm:$0xf]
        %v284 = vld [vmem:[%s220 + $0x60] sm:$0xf]
        %v285 = vld [vmem:[%s220 + $0x64] sm:$0xf]
        %v286 = vld [vmem:[%s220 + $0x68] sm:$0xf]
        %v287 = vld [vmem:[%s220 + $0x6c] sm:$0xf]
        %v288 = vld [vmem:[%s220 + $0x70] sm:$0xf]
        %v289 = vld [vmem:[%s220 + $0x74] sm:$0xf]
        %v290 = vld [vmem:[%s220 + $0x78] sm:$0xf]
        %v291 = vld [vmem:[%s220 + $0x7c] sm:$0xf]
        %v292 = vld [vmem:[%s220 + $0x80] sm:$0xf]
        %v293 = vld [vmem:[%s220 + $0x84] sm:$0xf]
        %v294 = vld [vmem:[%s220 + $0x88] sm:$0xf]
        %v295 = vld [vmem:[%s220 + $0x8c] sm:$0xf]
        %v296 = vld [vmem:[%s220 + $0x90] sm:$0xf]
        %v297 = vld [vmem:[%s220 + $0x94] sm:$0xf]
        %v298 = vld [vmem:[%s220 + $0x98] sm:$0xf]
        %v299 = vld [vmem:[%s220 + $0x9c] sm:$0xf]
        %v300 = vld [vmem:[%s220 + $0xa0] sm:$0xf]
        %v301 = vld [vmem:[%s220 + $0xa4] sm:$0xf]
        %v302 = vld [vmem:[%s220 + $0xa8] sm:$0xf]
        %v303 = vld [vmem:[%s220 + $0xac] sm:$0xf]
        %v304 = vld [vmem:[%s220 + $0xb0] sm:$0xf]
        %v305 = vld [vmem:[%s220 + $0xb4] sm:$0xf]
        %v306 = vld [vmem:[%s220 + $0xb8] sm:$0xf]
        %v307 = vld [vmem:[%s220 + $0xbc] sm:$0xf]
        %v308 = vld [vmem:[%s220 + $0xc0] sm:$0xf]
        %v309 = vld [vmem:[%s220 + $0xc4] sm:$0xf]
        %v310 = vld [vmem:[%s220 + $0xc8] sm:$0xf]
        %v311 = vld [vmem:[%s220 + $0xcc] sm:$0xf]
        %v312 = vld [vmem:[%s220 + $0xd0] sm:$0xf]
        %v313 = vld [vmem:[%s220 + $0xd4] sm:$0xf]
        %v314 = vld [vmem:[%s220 + $0xd8] sm:$0xf]
        %v315 = vld [vmem:[%s220 + $0xdc] sm:$0xf]
        %v316 = vld [vmem:[%s220 + $0xe0] sm:$0xf]
        %v317 = vld [vmem:[%s220 + $0xe4] sm:$0xf]
        %v318 = vld [vmem:[%s220 + $0xe8] sm:$0xf]
        %v319 = vld [vmem:[%s220 + $0xec] sm:$0xf]
        %v320 = vld [vmem:[%s220 + $0xf0] sm:$0xf]
        %v321 = vld [vmem:[%s220 + $0xf4] sm:$0xf]
        %v322 = vld [vmem:[%s220 + $0xf8] sm:$0xf]
        %v323 = vld [vmem:[%s220 + $0xfc] sm:$0xf]
        %v326 = vunpack.c.l.b16 %v258
        %v327 = vunpack.c.h.b16 %v258
        %v328 = vunpack.c.l.b16 %v259
        %v329 = vunpack.c.h.b16 %v259
        %v330 = vpack.c.b16 %v326, %v326
        %v331 = vpack.c.b16 %v327, %v327
        %v332 = vpack.c.b16 %v328, %v328
        %v333 = vpack.c.b16 %v329, %v329
        %v402 = vunpack.c.l.b16 %v260
        %v403 = vunpack.c.l.b16 %v261
        %v404 = vunpack.c.l.b16 %v262
        %v405 = vunpack.c.l.b16 %v263
        %v406 = vunpack.c.l.b16 %v264
        %v407 = vunpack.c.l.b16 %v265
        %v408 = vunpack.c.l.b16 %v266
        %v409 = vunpack.c.l.b16 %v267
        %v410 = vunpack.c.l.b16 %v268
        %v411 = vunpack.c.l.b16 %v269
        %v412 = vunpack.c.l.b16 %v270
        %v413 = vunpack.c.l.b16 %v271
        %v414 = vunpack.c.l.b16 %v272
        %v415 = vunpack.c.l.b16 %v273
        %v416 = vunpack.c.l.b16 %v274
        %v417 = vunpack.c.l.b16 %v275
        %v418 = vunpack.c.l.b16 %v276
        %v419 = vunpack.c.l.b16 %v277
        %v420 = vunpack.c.l.b16 %v278
        %v421 = vunpack.c.l.b16 %v279
        %v422 = vunpack.c.l.b16 %v280
        %v423 = vunpack.c.l.b16 %v281
        %v424 = vunpack.c.l.b16 %v282
        %v425 = vunpack.c.l.b16 %v283
        %v426 = vunpack.c.l.b16 %v284
        %v427 = vunpack.c.l.b16 %v285
        %v428 = vunpack.c.l.b16 %v286
        %v429 = vunpack.c.l.b16 %v287
        %v430 = vunpack.c.l.b16 %v288
        %v431 = vunpack.c.l.b16 %v289
        %v432 = vunpack.c.l.b16 %v290
        %v433 = vunpack.c.l.b16 %v291
        %v434 = vunpack.c.l.b16 %v292
        %v435 = vunpack.c.l.b16 %v293
        %v436 = vunpack.c.l.b16 %v294
        %v437 = vunpack.c.l.b16 %v295
        %v438 = vunpack.c.l.b16 %v296
        %v439 = vunpack.c.l.b16 %v297
        %v440 = vunpack.c.l.b16 %v298
        %v441 = vunpack.c.l.b16 %v299
        %v442 = vunpack.c.l.b16 %v300
        %v443 = vunpack.c.l.b16 %v301
        %v444 = vunpack.c.l.b16 %v302
        %v445 = vunpack.c.l.b16 %v303
        %v446 = vunpack.c.l.b16 %v304
        %v447 = vunpack.c.l.b16 %v305
        %v448 = vunpack.c.l.b16 %v306
        %v449 = vunpack.c.l.b16 %v307
        %v450 = vunpack.c.l.b16 %v308
        %v451 = vunpack.c.l.b16 %v309
        %v452 = vunpack.c.l.b16 %v310
        %v453 = vunpack.c.l.b16 %v311
        %v454 = vunpack.c.l.b16 %v312
        %v455 = vunpack.c.l.b16 %v313
        %v456 = vunpack.c.l.b16 %v314
        %v457 = vunpack.c.l.b16 %v315
        %v458 = vunpack.c.l.b16 %v316
        %v459 = vunpack.c.l.b16 %v317
        %v460 = vunpack.c.l.b16 %v318
        %v461 = vunpack.c.l.b16 %v319
        %v462 = vunpack.c.l.b16 %v320
        %v463 = vunpack.c.l.b16 %v321
        %v464 = vunpack.c.l.b16 %v322
        %v465 = vunpack.c.l.b16 %v323
        %v466 = vpack.c.b16 %v403, %v402
        %v467 = vpack.c.b16 %v405, %v404
        %v468 = vpack.c.b16 %v407, %v406
        %v469 = vpack.c.b16 %v409, %v408
        %v470 = vpack.c.b16 %v411, %v410
        %v471 = vpack.c.b16 %v413, %v412
        %v472 = vpack.c.b16 %v415, %v414
        %v473 = vpack.c.b16 %v417, %v416
        %v474 = vpack.c.b16 %v419, %v418
        %v475 = vpack.c.b16 %v421, %v420
        %v476 = vpack.c.b16 %v423, %v422
        %v477 = vpack.c.b16 %v425, %v424
        %v478 = vpack.c.b16 %v427, %v426
        %v479 = vpack.c.b16 %v429, %v428
        %v480 = vpack.c.b16 %v431, %v430
        %v481 = vpack.c.b16 %v433, %v432
        %v482 = vpack.c.b16 %v435, %v434
        %v483 = vpack.c.b16 %v437, %v436
        %v484 = vpack.c.b16 %v439, %v438
        %v485 = vpack.c.b16 %v441, %v440
        %v486 = vpack.c.b16 %v443, %v442
        %v487 = vpack.c.b16 %v445, %v444
        %v488 = vpack.c.b16 %v447, %v446
        %v489 = vpack.c.b16 %v449, %v448
        %v490 = vpack.c.b16 %v451, %v450
        %v491 = vpack.c.b16 %v453, %v452
        %v492 = vpack.c.b16 %v455, %v454
        %v493 = vpack.c.b16 %v457, %v456
        %v494 = vpack.c.b16 %v459, %v458
        %v495 = vpack.c.b16 %v461, %v460
        %v496 = vpack.c.b16 %v463, %v462
        %v497 = vpack.c.b16 %v465, %v464
        %530 = vmatprep.subr.bf16.mxu0 0
        %531 = vmatpush1.bf16.msra.mxu0 %v473
        %532 = vmatprep.subr.bf16.mxu0 0
        %533 = vmatpush1.bf16.msra.mxu0 %v472
        %534 = vmatprep.subr.bf16.mxu0 0
        %535 = vmatpush1.bf16.msra.mxu0 %v471
        %536 = vmatprep.subr.bf16.mxu0 0
        %537 = vmatpush1.bf16.msra.mxu0 %v470
        %538 = vmatprep.subr.bf16.mxu0 0
        %539 = vmatpush1.bf16.msra.mxu0 %v469
        %540 = vmatprep.subr.bf16.mxu0 0
        %541 = vmatpush1.bf16.msra.mxu0 %v468
        %542 = vmatprep.subr.bf16.mxu0 0
        %543 = vmatpush1.bf16.msra.mxu0 %v467
        %544 = vmatprep.subr.bf16.mxu0 0
        %545 = vmatpush1.bf16.msra.mxu0 %v466
        %546 = vmatprep.subr.bf16.mxu0 0
        %547 = vmatpush2.bf16.msra.mxu0 %v481
        %548 = vmatprep.subr.bf16.mxu0 0
        %549 = vmatpush2.bf16.msra.mxu0 %v480
        %550 = vmatprep.subr.bf16.mxu0 0
        %551 = vmatpush2.bf16.msra.mxu0 %v479
        %552 = vmatprep.subr.bf16.mxu0 0
        %553 = vmatpush2.bf16.msra.mxu0 %v478
        %554 = vmatprep.subr.bf16.mxu0 0
        %555 = vmatpush2.bf16.msra.mxu0 %v477
        %556 = vmatprep.subr.bf16.mxu0 0
        %557 = vmatpush2.bf16.msra.mxu0 %v476
        %558 = vmatprep.subr.bf16.mxu0 0
        %559 = vmatpush2.bf16.msra.mxu0 %v475
        %560 = vmatprep.subr.bf16.mxu0 0
        %561 = vmatpush2.bf16.msra.mxu0 %v474
        %562 = vmatprep.mubr.bf16.mxu0 %v331
        %563 = vmatmul.mubr.bf16.gmra.mxu0 %v330
        %v564 = vpop.f32.mrf.mxu0
        %v565 = vadd.f32 0.0, %v564
        %v566 = vpop.f32.mrf.mxu0
        %v567 = vpop.f32.mrf.mxu0
        %v568 = vpop.f32.mrf.mxu0
        %569 = vdwg.mxu0
        %570 = vmatprep.subr.bf16.mxu0 0
        %571 = vmatpush1.bf16.msra.mxu0 %v489
        %572 = vmatprep.subr.bf16.mxu0 0
        %573 = vmatpush1.bf16.msra.mxu0 %v488
        %574 = vmatprep.subr.bf16.mxu0 0
        %575 = vmatpush1.bf16.msra.mxu0 %v487
        %576 = vmatprep.subr.bf16.mxu0 0
        %577 = vmatpush1.bf16.msra.mxu0 %v486
        %578 = vmatprep.subr.bf16.mxu0 0
        %579 = vmatpush1.bf16.msra.mxu0 %v485
        %580 = vmatprep.subr.bf16.mxu0 0
        %581 = vmatpush1.bf16.msra.mxu0 %v484
        %582 = vmatprep.subr.bf16.mxu0 0
        %583 = vmatpush1.bf16.msra.mxu0 %v483
        %584 = vmatprep.subr.bf16.mxu0 0
        %585 = vmatpush1.bf16.msra.mxu0 %v482
        %586 = vmatprep.subr.bf16.mxu0 0
        %587 = vmatpush2.bf16.msra.mxu0 %v497
        %588 = vmatprep.subr.bf16.mxu0 0
        %589 = vmatpush2.bf16.msra.mxu0 %v496
        %590 = vmatprep.subr.bf16.mxu0 0
        %591 = vmatpush2.bf16.msra.mxu0 %v495
        %592 = vmatprep.subr.bf16.mxu0 0
        %593 = vmatpush2.bf16.msra.mxu0 %v494
        %594 = vmatprep.subr.bf16.mxu0 0
        %595 = vmatpush2.bf16.msra.mxu0 %v493
        %596 = vmatprep.subr.bf16.mxu0 0
        %597 = vmatpush2.bf16.msra.mxu0 %v492
        %598 = vmatprep.subr.bf16.mxu0 0
        %599 = vmatpush2.bf16.msra.mxu0 %v491
        %600 = vmatprep.subr.bf16.mxu0 0
        %601 = vmatpush2.bf16.msra.mxu0 %v490
        %602 = vmatprep.mubr.bf16.mxu0 %v333
        %603 = vmatmul.mubr.bf16.gmra.mxu0 %v332
        %v604 = vpop.f32.mrf.mxu0
        %v605 = vadd.f32 %v565, %v604
        %v606 = vpop.f32.mrf.mxu0
        %v607 = vpop.f32.mrf.mxu0
        %v608 = vpop.f32.mrf.mxu0
        %609 = vdwg.mxu0
        %v610 = vadd.f32 %v257, %v605
        %611 = vst [vmem:[#allocation2] sm:$0xff] %v610
        %p612 = scmp.eq.s32.totalorder %s26, 1
        // Predicated region
        $region45: #{tpu_custom_call.1} parent=31 // pred_check
          %p613 = pneg %p612
        $region46: #{tpu_custom_call.1} parent=31 // pred_check_branch
          %615 = sbr.rel (%p613) target = $region48
        $region47: #{tpu_custom_call.1} parent=31 // pred_region
          %v616 = vld [vmem:[#allocation2] sm:$0xff]
          %v617 = vld [vmem:[%s250] sm:$0x1]
          %v619 = vlaneseq
          %v620 = vshrl.u32 %v619, 7
          %v621 = vsub.s32 0, %v620
          %v622 = vrot.slane %v617, %v621
          %v624 = vadd.f32 %v616, %v622
          %625 = vst [vmem:[#allocation8] sm:$0xff] %v624
        $region48: #{tpu_custom_call.1} parent=31 // pred_fallthru
          _
        // Predicated region
        $region49: #{tpu_custom_call.1} parent=31 // pred_check
          %p626 = pneg %p131
        $region50: #{tpu_custom_call.1} parent=31 // pred_check_branch
          %628 = sbr.rel (%p626) target = $region52
        $region51: #{tpu_custom_call.1} parent=31 // pred_region
          %s630 = ssub.s32 128, 128
          %631 = vsyncadd [#allocation5], %s630
          %s632 = smul.addr %s25, 128
          %s633 = scalar_lea.hbm %s3, %s632
          %s635 = sshll.u32 [#allocation8], 4
          %s636 = int_to_ptr.vmem [resolvable:$true] %s635
          %638 = dma.vmem_to_hbm [thread:$0]  %s636, 128, %s633, [#allocation5]
        $region52: #{tpu_custom_call.1} parent=31 // pred_fallthru
          _
        // Predicated region
        $region53: #{tpu_custom_call.1} parent=31 // pred_check
          %p639 = pneg %p131
        $region54: #{tpu_custom_call.1} parent=31 // pred_check_branch
          %641 = sbr.rel (%p639) target = $region56
        $region55: #{tpu_custom_call.1} parent=31 // pred_region
          %642 = dma.done [#allocation5], 128
        $region56: #{tpu_custom_call.1} parent=31 // pred_fallthru
          _
      $region32: #{tpu_custom_call.1} parent=5 // pred_fallthru
        _
      %p643 = scmp.le.s32.totalorder 2, %s16
      // Predicated region
      $region57: #{tpu_custom_call.1} parent=5 // pred_check
        %p644 = pneg %p643
      $region58: #{tpu_custom_call.1} parent=5 // pred_check_branch
        %646 = sbr.rel (%p644) target = $region60
      $region59: #{tpu_custom_call.1} parent=5 // pred_region
        %s647 = ssub.s32 %s16, 2
      $region60: #{tpu_custom_call.1} parent=5 // pred_fallthru
        _
    $region6: #{tpu_custom_call.1} parent=1 // loop_footer
      %s20 = sadd.s32 1, %s16
    $region7: #{tpu_custom_call.1} parent=1 // loop_footer_branch
      %15 = sbr.rel target = $region3
    $region8: #{tpu_custom_call.1} parent=1 // loop_exit
      _
    %648 = vsyncpa [#allocation4], 1
    %s649 = scalar_lea.sflag [#allocation4], 1
    %650 = vsyncpa %s649, 1
    %651 = vsyncpa [#allocation7], 1
    %s652 = scalar_lea.sflag [#allocation7], 1
    %653 = vsyncpa %s652, 1
    %654 = vsyncpa [#allocation5], 1
    %s655 = scalar_lea.sflag [#allocation5], 1
    %656 = vsyncpa %s655, 1

</llo_original>
